<compile_context>
chip_gen: v7x
topology: tpu7x:2x2x1
jax: 0.10.0
libtpu: 0.0.40
codegen_flags: <defaults>
</compile_context>

<pallas_src>
import functools

import jax
import jax.numpy as jnp
from jax.experimental import pallas as pl
from jax.experimental.pallas import tpu as pltpu


def _round_up(v, m):
    return ((v + m - 1) // m) * m


def _round_down(v, m):
    return max(m, (v // m) * m)


def _choose_tile_m(M, tile_m, bytes_per_row):
    """Pick the M row-tile.

    Goals: >= 2 grid steps when M allows it (v7x has 2 TensorCores and the M
    axis is 'parallel'), 256-aligned tiles for large M (2x256 MXU on v6e/v7x),
    8-aligned otherwise, no jnp.pad of M (partial last tile is masked by
    Pallas), and double-buffered X/out tiles well inside the VMEM budget
    (32 MiB scoped limit; also fine for v7x's 64 MiB physical per-TC VMEM).
    """
    if M <= 8:
        return M  # single full-dim tile is always a legal block
    if M <= 512:
        half = _round_up((M + 1) // 2, 8)
        tm = half if half < M else M
    else:
        tm = min(tile_m, _round_up((M + 1) // 2, 256))
        tm = _round_down(tm, 256)
    # VMEM clamp: X tile + out tile are double-buffered by the pipeline.
    budget = 24 * 1024 * 1024
    while tm > 256 and 2 * tm * bytes_per_row > budget:
        tm = _round_down(tm // 2, 256)
    return tm


def _patch_embed_kernel(x_ref, w_ref, b_ref, o_ref):
    # (tm, K) @ (K, N) on the MXU with f32 accumulation, bias add in f32.
    acc = jnp.dot(x_ref[...], w_ref[...], preferred_element_type=jnp.float32)
    o_ref[...] = (acc + b_ref[...]).astype(o_ref.dtype)


def patch_embed_pallas(x, weight, bias, patch_size, *, tile_m=1024,
                       compute_dtype=jnp.bfloat16, out_dtype=None):
    """x: (B, C, H, W); weight: (E, C, P, P); bias: (E,) -> (B, num_patches, E)."""
    B, C, H, W = x.shape
    E = weight.shape[0]
    P = patch_size
    assert H % P == 0 and W % P == 0, "H/W must be multiples of patch_size"
    gh, gw = H // P, W // P
    num_patches = gh * gw

    out_dtype = x.dtype if out_dtype is None else jnp.dtype(out_dtype)

    # --- patchify: (B,C,H,W) -> (B*np, C*P*P), flatten order (c, kh, kw) ----
    # Left as JAX ops; allow_input_fusion below lets XLA fuse this producer
    # into the pallas_call's input DMA instead of a separate HBM materialize.
    xp = x.reshape(B, C, gh, P, gw, P)
    xp = jnp.transpose(xp, (0, 2, 4, 1, 3, 5))          # (B, gh, gw, C, P, P)
    xp = xp.reshape(B * num_patches, C * P * P).astype(compute_dtype)

    # Conv weight (E, C, P, P) -> (K, E); bias -> (1, E) in f32.
    w2d = weight.reshape(E, C * P * P).T.astype(compute_dtype)
    b2d = bias.reshape(1, E).astype(jnp.float32)

    M, K = B * num_patches, C * P * P
    N = E

    in_bytes = jnp.dtype(compute_dtype).itemsize
    out_bytes = jnp.dtype(out_dtype).itemsize
    tm = _choose_tile_m(M, tile_m, K * in_bytes + N * out_bytes)
    grid_m = pl.cdiv(M, tm)

    cost = pl.CostEstimate(
        flops=2 * M * K * N,
        transcendentals=0,
        bytes_accessed=(M * K + K * N) * in_bytes + N * 4 + M * N * out_bytes,
    )

    out2d = pl.pallas_call(
        _patch_embed_kernel,
        out_shape=jax.ShapeDtypeStruct((M, N), out_dtype),
        grid_spec=pltpu.PrefetchScalarGridSpec(
            num_scalar_prefetch=0,
            grid=(grid_m,),
            in_specs=[
                # X: one (tm, K) row tile per grid step (double-buffered);
                # K is the full array dim so no 128-padding is needed.
                pl.BlockSpec((tm, K), lambda i: (i, 0)),
                # W: same block every step -> stays resident in VMEM.
                pl.BlockSpec((K, N), lambda i: (0, 0)),
                # bias: resident in VMEM.
                pl.BlockSpec((1, N), lambda i: (0, 0)),
            ],
            # N is the full array dim; for small E this accepts vst.msk rather
            # than paying a pad + slice HBM round-trip (review trade-off).
            out_specs=pl.BlockSpec((tm, N), lambda i: (i, 0)),
        ),
        compiler_params=pltpu.CompilerParams(
            dimension_semantics=("parallel",),
            vmem_limit_bytes=32 * 1024 * 1024,
            allow_input_fusion=[True, True, True],
        ),
        cost_estimate=cost,
    )(xp, w2d, b2d)

    return out2d.reshape(B, num_patches, E)


if __name__ == "__main__":
    # Small shapes consistent with the module: img_size=16, patch_size=4,
    # in_chans=4, embed_dim=32, batch=2  -> num_patches = 16.
    B, C, H, Wd = 2, 4, 16, 16
    P = 4
    E = 32

    key = jax.random.PRNGKey(0)
    kx, kw, kb = jax.random.split(key, 3)
    x = jax.random.normal(kx, (B, C, H, Wd), dtype=jnp.float32)
    weight = jax.random.normal(kw, (E, C, P, P), dtype=jnp.float32) * 0.02
    bias = jax.random.normal(kb, (E,), dtype=jnp.float32) * 0.02

    fn = jax.jit(functools.partial(patch_embed_pallas, patch_size=P))
    out = fn(x, weight, bias)
    out = jax.block_until_ready(out)

    # Reference: same semantics as nn.Conv2d(stride=kernel) + flatten + transpose.
    # Tolerance loosened because the kernel computes in bf16 with f32 accumulate.
    ref = jax.lax.conv_general_dilated(
        x, weight, window_strides=(P, P), padding="VALID",
        dimension_numbers=("NCHW", "OIHW", "NCHW"))
    ref = ref + bias.reshape(1, E, 1, 1)
    ref = ref.reshape(B, E, -1).transpose(0, 2, 1)

    assert out.shape == (B, (H // P) * (Wd // P), E)
    assert out.dtype == x.dtype
    assert jnp.allclose(out, ref, atol=2e-2, rtol=2e-2)

    print("KERNEL_OK")
</pallas_src>

<mosaic_0001>
module attributes {stable_mosaic.version = 11 : i64} {
  func.func @_patch_embed_kernel(%arg0: i32, %arg1: memref<16x64xbf16, #tpu.memory_space<vmem>>, %arg2: memref<64x32xbf16, #tpu.memory_space<vmem>>, %arg3: memref<1x32xf32, #tpu.memory_space<vmem>>, %arg4: memref<16x32xf32, #tpu.memory_space<vmem>>) attributes {dimension_semantics = [#tpu.dimension_semantics<parallel>], iteration_bounds = array<i64: 2>, scalar_prefetch = 0 : i64, scratch_operands = 0 : i64, tpu.core_type = #tpu.core_type<tc>, window_params = [{transform_indices = @transform_0, window_bounds = array<i64: 16, 64>}, {pipeline_mode = #tpu.pipeline_mode<synchronous>, transform_indices = @transform_1, window_bounds = array<i64: 64, 32>}, {pipeline_mode = #tpu.pipeline_mode<synchronous>, transform_indices = @transform_2, window_bounds = array<i64: 1, 32>}, {transform_indices = @transform_3, window_bounds = array<i64: 16, 32>}]} {
    %c0 = arith.constant 0 : index
    %c0_0 = arith.constant 0 : index
    %0 = vector.load %arg1[%c0, %c0_0] : memref<16x64xbf16, #tpu.memory_space<vmem>>, vector<16x64xbf16>
    %c0_1 = arith.constant 0 : index
    %c0_2 = arith.constant 0 : index
    %1 = vector.load %arg2[%c0_1, %c0_2] : memref<64x32xbf16, #tpu.memory_space<vmem>>, vector<64x32xbf16>
    %cst = arith.constant dense<0.000000e+00> : vector<16x32xf32>
    %2 = tpu.matmul %0, %1, %cst {dimension_numbers = #tpu.dot_dimension_numbers<[1], [0], [0], [1], [0, 0, 1, 1], [], []>} : vector<16x64xbf16>, vector<64x32xbf16>, vector<16x32xf32> -> vector<16x32xf32>
    %c0_3 = arith.constant 0 : index
    %c0_4 = arith.constant 0 : index
    %3 = vector.load %arg3[%c0_3, %c0_4] : memref<1x32xf32, #tpu.memory_space<vmem>>, vector<1x32xf32>
    %4 = vector.broadcast %3 : vector<1x32xf32> to vector<16x32xf32>
    %5 = arith.addf %2, %4 : vector<16x32xf32>
    %c0_5 = arith.constant 0 : index
    %c0_6 = arith.constant 0 : index
    %6 = vector.load %arg4[%c0_5, %c0_6] : memref<16x32xf32, #tpu.memory_space<vmem>>, vector<16x32xf32>
    tpu.vector_store %arg4[%c0_5, %c0_6], %5 {strides = array<i32>} : memref<16x32xf32, #tpu.memory_space<vmem>>, vector<16x32xf32>,
    return
  }
  func.func @transform_0(%arg0: i32) -> (i32, i32) {
    %c0_i32 = arith.constant 0 : i32
    %c0_i32_0 = arith.constant 0 : i32
    return %arg0, %c0_i32 : i32, i32
  }
  func.func @transform_1(%arg0: i32) -> (i32, i32) {
    %c0_i32 = arith.constant 0 : i32
    %c0_i32_0 = arith.constant 0 : i32
    %c0_i32_1 = arith.constant 0 : i32
    return %c0_i32, %c0_i32_0 : i32, i32
  }
  func.func @transform_2(%arg0: i32) -> (i32, i32) {
    %c0_i32 = arith.constant 0 : i32
    %c0_i32_0 = arith.constant 0 : i32
    %c0_i32_1 = arith.constant 0 : i32
    return %c0_i32, %c0_i32_0 : i32, i32
  }
  func.func @transform_3(%arg0: i32) -> (i32, i32) {
    %c0_i32 = arith.constant 0 : i32
    %c0_i32_0 = arith.constant 0 : i32
    return %arg0, %c0_i32 : i32, i32
  }
}

</mosaic_0001>

<llo_original>
// kernel: patch_embed_pallas.2
$region0: #{patch_embed_pallas.2}
  #allocation0 [shape = 'u32[]', space=smem, size = 0x4, offset = 0x4, fixed_abs, tag = 'smem constant byte address 0x4 - core index']
  #allocation1 [shape = 'u32[144,128]{1,0:T(1,128)}', space=vmem, size = 0x12000, scoped, tag = 'internal scratch']
  %s0 = inlined_call_operand.vmem [shape: bf16[32,64], index: 0, kind: input, shape index: {}]
  %s1 = inlined_call_operand.vmem [shape: bf16[64,32], index: 1, kind: input, shape index: {}]
  %s2 = inlined_call_operand.vmem [shape: f32[32], index: 2, kind: input, shape index: {}]
  %s3 = inlined_call_operand.hbm [shape: f32[32,32], index: 3, kind: output, shape index: {}]
  %s4 = sld [smem:[#allocation0]]
  $region45: #{patch_embed_pallas.2} parent=0
    _
  %s6 = ssub.s32 1, %s4
  %s7 = scalar_select 0, %s6, %s4
  $region1: #{patch_embed_pallas.2} parent=0
    #allocation2 [shape = 'u8[16384]{0}', space=vmem, size = 0x4000, scoped, tag = 'output window, operand 0']
    #allocation3 [shape = 's32[2]{0}', space=sflag, size = 0x8, scoped, tag = 'scoped memory for patch_embed_pallas.2']
    %8 = vsyncpa [#allocation3], 0
    %s9 = scalar_lea.sflag [#allocation3], 1
    %10 = vsyncpa %s9, 0
    loop: start=0, step=1, limit=4
    $region2: #{patch_embed_pallas.2} parent=1 // loop_pre_header
      _
    $region3: #{patch_embed_pallas.2} parent=1 // loop_header
      %s12 = sphi 0, %s16
      %p13 = scmp.ge.s32.totalorder %s12, 4
      %s22 = sphi 0, %s24
      %s25 = sphi 0, %s22
      %s26 = sphi 0, %s25
      %s42 = sphi 0, %s26
      %s46 = sphi 0, %s46
      %s48 = sphi 0, %s46
      %s49 = sphi 0, %s48
      %s63 = sphi 0, %s49
      %s67 = sphi 0, %s67
      %s69 = sphi 0, %s67
      %s70 = sphi 0, %s69
      %s84 = sphi 0, %s70
      %s90 = sphi 0, %s92
      %s93 = sphi 0, %s90
      %s94 = sphi 0, %s93
      %s110 = sphi 0, %s94
    $region4: #{patch_embed_pallas.2} parent=1 // loop_header_branch
      %15 = sbr.rel (%p13) target = $region8
    $region5: #{patch_embed_pallas.2} parent=1 // loop_body
      %s17 = ssub.s32 %s12, 1
      %s18 = ssub.s32 %s12, 2
      %s19 = sadd.s32 %s12, 1
      %s20 = ssub.s32 %s12, %s19
      %p21 = scmp.eq.s32.totalorder %s20, 0
      %s23 = sadd.s32 %s22, 1
      %s24 = scalar_select %p21, %s22, %s23
      %p27 = pneg %p21
      %p28 = scmp.eq.s32.totalorder %s12, 1
      %p29 = por %p27, %p28
      %p30 = scmp.ne.s32.totalorder %s22, %s25
      %p31 = scmp.eq.s32.totalorder %s12, 0
      %p32 = por %p30, %p31
      %p33 = scmp.ne.s32.totalorder %s22, %s25
      %p34 = scmp.eq.s32.totalorder %s17, 1
      %p35 = por %p33, %p34
      %p36 = scmp.ne.s32.totalorder %s25, %s26
      %p37 = scmp.eq.s32.totalorder %s17, 0
      %p38 = por %p36, %p37
      %p39 = scmp.ne.s32.totalorder %s25, %s26
      %p40 = scmp.eq.s32.totalorder %s18, 1
      %p41 = por %p39, %p40
      %p43 = scmp.ne.s32.totalorder %s26, %s42
      %p44 = scmp.eq.s32.totalorder %s18, 0
      %p45 = por %p43, %p44
      %s47 = sadd.s32 %s46, 1
      %p50 = scmp.eq.s32.totalorder %s12, 1
      %p51 = scmp.ne.s32.totalorder %s46, %s48
      %p52 = scmp.eq.s32.totalorder %s12, 0
      %p53 = por %p51, %p52
      %p54 = scmp.ne.s32.totalorder %s46, %s48
      %p55 = scmp.eq.s32.totalorder %s17, 1
      %p56 = por %p54, %p55
      %p57 = scmp.ne.s32.totalorder %s48, %s49
      %p58 = scmp.eq.s32.totalorder %s17, 0
      %p59 = por %p57, %p58
      %p60 = scmp.ne.s32.totalorder %s48, %s49
      %p61 = scmp.eq.s32.totalorder %s18, 1
      %p62 = por %p60, %p61
      %p64 = scmp.ne.s32.totalorder %s49, %s63
      %p65 = scmp.eq.s32.totalorder %s18, 0
      %p66 = por %p64, %p65
      %s68 = sadd.s32 %s67, 1
      %p71 = scmp.eq.s32.totalorder %s12, 1
      %p72 = scmp.ne.s32.totalorder %s67, %s69
      %p73 = scmp.eq.s32.totalorder %s12, 0
      %p74 = por %p72, %p73
      %p75 = scmp.ne.s32.totalorder %s67, %s69
      %p76 = scmp.eq.s32.totalorder %s17, 1
      %p77 = por %p75, %p76
      %p78 = scmp.ne.s32.totalorder %s69, %s70
      %p79 = scmp.eq.s32.totalorder %s17, 0
      %p80 = por %p78, %p79
      %p81 = scmp.ne.s32.totalorder %s69, %s70
      %p82 = scmp.eq.s32.totalorder %s18, 1
      %p83 = por %p81, %p82
      %p85 = scmp.ne.s32.totalorder %s70, %s84
      %p86 = scmp.eq.s32.totalorder %s18, 0
      %p87 = por %p85, %p86
      %s88 = ssub.s32 %s12, %s19
      %p89 = scmp.eq.s32.totalorder %s88, 0
      %s91 = sadd.s32 %s90, 1
      %s92 = scalar_select %p89, %s90, %s91
      %p95 = pneg %p89
      %p96 = scmp.eq.s32.totalorder %s12, 1
      %p97 = por %p95, %p96
      %p98 = scmp.ne.s32.totalorder %s90, %s93
      %p99 = scmp.eq.s32.totalorder %s12, 0
      %p100 = por %p98, %p99
      %p101 = scmp.ne.s32.totalorder %s90, %s93
      %p102 = scmp.eq.s32.totalorder %s17, 1
      %p103 = por %p101, %p102
      %p104 = scmp.ne.s32.totalorder %s93, %s94
      %p105 = scmp.eq.s32.totalorder %s17, 0
      %p106 = por %p104, %p105
      %p107 = scmp.ne.s32.totalorder %s93, %s94
      %p108 = scmp.eq.s32.totalorder %s18, 1
      %p109 = por %p107, %p108
      %p111 = scmp.ne.s32.totalorder %s94, %s110
      %p112 = scmp.eq.s32.totalorder %s18, 0
      %p113 = por %p111, %p112
      %p114 = scmp.le.s32.totalorder 1, %s12
      %p115 = scmp.lt.s32.totalorder %s12, 3
      %p116 = pnand %p114, %p115
      %p117 = pneg %p116
      // Predicated region
      $region9: #{patch_embed_pallas.2} parent=5 // pred_check
        _
      $region10: #{patch_embed_pallas.2} parent=5 // pred_check_branch
        %119 = sbr.rel (%p116) target = $region12
      $region11: #{patch_embed_pallas.2} parent=5 // pred_region
        %s120 = ssub.s32 %s12, 1
        // Predicated region
        $region13: #{patch_embed_pallas.2} parent=11 // pred_check
          %p121 = pneg %p59
        $region14: #{patch_embed_pallas.2} parent=11 // pred_check_branch
          %123 = sbr.rel (%p121) target = $region16
        $region15: #{patch_embed_pallas.2} parent=11 // pred_region
          _
        $region16: #{patch_embed_pallas.2} parent=11 // pred_fallthru
          _
        // Predicated region
        $region17: #{patch_embed_pallas.2} parent=11 // pred_check
          %p124 = pneg %p80
        $region18: #{patch_embed_pallas.2} parent=11 // pred_check_branch
          %126 = sbr.rel (%p124) target = $region20
        $region19: #{patch_embed_pallas.2} parent=11 // pred_region
          _
        $region20: #{patch_embed_pallas.2} parent=11 // pred_fallthru
          _
      $region12: #{patch_embed_pallas.2} parent=5 // pred_fallthru
        _
      %p127 = scmp.lt.s32.totalorder %s12, 2
      // Predicated region
      $region21: #{patch_embed_pallas.2} parent=5 // pred_check
        %p128 = pneg %p127
      $region22: #{patch_embed_pallas.2} parent=5 // pred_check_branch
        %130 = sbr.rel (%p128) target = $region24
      $region23: #{patch_embed_pallas.2} parent=5 // pred_region
        // Predicated region
        $region25: #{patch_embed_pallas.2} parent=23 // pred_check
          %p131 = pneg %p32
        $region26: #{patch_embed_pallas.2} parent=23 // pred_check_branch
          %133 = sbr.rel (%p131) target = $region28
        $region27: #{patch_embed_pallas.2} parent=23 // pred_region
          %s134 = smul.u32 2, %s12
          %p135 = scmp.lt.s32.totalorder %s134, 3
          %s136 = scalar_select %p135, %s134, 3
          %s137 = smul.addr %s136, 4
          %s138 = scalar_lea.vmem %s0, %s137
          %s139 = smul.u32 2, %s12
        $region28: #{patch_embed_pallas.2} parent=23 // pred_fallthru
          _
      $region24: #{patch_embed_pallas.2} parent=5 // pred_fallthru
        _
      %p140 = scmp.le.s32.totalorder 1, %s12
      %p141 = scmp.lt.s32.totalorder %s12, 3
      %p142 = pnand %p140, %p141
      %p143 = pneg %p142
      // Predicated region
      $region29: #{patch_embed_pallas.2} parent=5 // pred_check
        _
      $region30: #{patch_embed_pallas.2} parent=5 // pred_check_branch
        %145 = sbr.rel (%p142) target = $region32
      $region31: #{patch_embed_pallas.2} parent=5 // pred_region
        #allocation4 [shape = 'u8[512]{0}', space=vmem, size = 0x400, dematerialized = true, scoped, tag = 'FusionAdapter Buffer %fusion.1 = f32[1,32]{1,0:T(1,128)} fusion(%param_2.1), kind=kLoop, calls=%fused_computation.2.clone, metadata={op_name="jit(patch_embed_pallas)/reshape" stack_frame_id=11}']
        %s146 = ssub.s32 %s12, 1
        %s147 = smul.u32 2, %s17
        %p148 = scmp.lt.s32.totalorder %s147, 3
        %s149 = scalar_select %p148, %s147, 3
        %s150 = smul.addr %s149, 4
        %s151 = scalar_lea.vmem %s0, %s150
        %p152 = pneg %p38
        %p153 = pneg %p35
        %p154 = pneg %p59
        %p155 = pneg %p56
        %p156 = pneg %p80
        %p157 = pneg %p77
        %p158 = pneg %p106
        %p159 = pneg %p103
        %s160 = sand.u32 %s93, 1
        %s161 = scalar_lea.sflag [#allocation3], %s160
        %s162 = sand.u32 %s93, 1
        %s163 = smul.addr %s162, 16
        %s164 = scalar_lea.vmem [#allocation2], %s163
        %s165 = smul.u32 2, %s17
        %p166 = scmp.lt.s32.totalorder %s165, 3
        %s167 = scalar_select %p166, %s165, 3
        %s168 = smul.addr %s167, 4
        %s169 = scalar_lea.vmem %s0, %s168
        %s170 = smul.u32 2, %s17
        %s171 = smul.u32 2, %s17
        %v172 = vld [vmem:[%s2] sm:$0x1]
        %174 = vst [vmem:[#allocation4] sm:$0x1] %v172
        %v176 = vld [vmem:[%s169] sm:$0xf]
        %v177 = vld [vmem:[%s169 + $0x4] sm:$0xf]
        %v178 = vld [vmem:[%s1] sm:$0xf]
        %v179 = vld [vmem:[%s1 + $0x4] sm:$0xf]
        %v180 = vld [vmem:[%s1 + $0x8] sm:$0xf]
        %v181 = vld [vmem:[%s1 + $0xc] sm:$0xf]
        %v182 = vld [vmem:[%s1 + $0x10] sm:$0xf]
        %v183 = vld [vmem:[%s1 + $0x14] sm:$0xf]
        %v184 = vld [vmem:[%s1 + $0x18] sm:$0xf]
        %v185 = vld [vmem:[%s1 + $0x1c] sm:$0xf]
        %v186 = vld [vmem:[#allocation4] sm:$0x1]
        %v188 = vlaneseq
        %v189 = vshrl.u32 %v188, 7
        %v190 = vsub.s32 0, %v189
        %v191 = vrot.slane %v186, %v190
        %v195 = vunpack.c.l.b16 %v176
        %v196 = vunpack.c.l.b16 %v177
        %v197 = vpack.c.b16 %v196, %v195
        %v206 = vunpack.c.l.b16 %v178
        %v207 = vunpack.c.l.b16 %v179
        %v208 = vunpack.c.l.b16 %v180
        %v209 = vunpack.c.l.b16 %v181
        %v210 = vunpack.c.l.b16 %v182
        %v211 = vunpack.c.l.b16 %v183
        %v212 = vunpack.c.l.b16 %v184
        %v213 = vunpack.c.l.b16 %v185
        %v214 = vpack.c.b16 %v207, %v206
        %v215 = vpack.c.b16 %v209, %v208
        %v216 = vpack.c.b16 %v211, %v210
        %v217 = vpack.c.b16 %v213, %v212
        %vm222 = vcmask 523264
        %v224 = vsel %vm222, %v197, 0
        %226 = vmatprep.subr.bf16.mxu0 0
        %227 = vmatpush1.bf16.msra.mxu0 %v214
        %228 = vmatprep.subr.bf16.mxu0 0
        %229 = vmatpush1.bf16.msra.mxu0 %v215
        %230 = vmatprep.subr.bf16.mxu0 0
        %231 = vmatpush1.bf16.msra.mxu0 %v216
        %232 = vmatprep.subr.bf16.mxu0 0
        %233 = vmatpush1.bf16.msra.mxu0 %v217
        %234 = vmatprep.subr.bf16.mxu0 0
        %235 = vmatpush1.bf16.msra.mxu0 0
        %236 = vmatprep.subr.bf16.mxu0 0
        %237 = vmatpush1.bf16.msra.mxu0 0
        %238 = vmatprep.subr.bf16.mxu0 0
        %239 = vmatpush1.bf16.msra.mxu0 0
        %240 = vmatprep.subr.bf16.mxu0 0
        %241 = vmatpush1.bf16.msra.mxu0 0
        %242 = vmatprep.subr.bf16.mxu0 0
        %243 = vmatpush1.bf16.msra.mxu0 0
        %244 = vmatprep.subr.bf16.mxu0 0
        %245 = vmatpush1.bf16.msra.mxu0 0
        %246 = vmatprep.subr.bf16.mxu0 0
        %247 = vmatpush1.bf16.msra.mxu0 0
        %248 = vmatprep.subr.bf16.mxu0 0
        %249 = vmatpush1.bf16.msra.mxu0 0
        %250 = vmatprep.subr.bf16.mxu0 0
        %251 = vmatpush1.bf16.msra.mxu0 0
        %252 = vmatprep.subr.bf16.mxu0 0
        %253 = vmatpush1.bf16.msra.mxu0 0
        %254 = vmatprep.subr.bf16.mxu0 0
        %255 = vmatpush1.bf16.msra.mxu0 0
        %256 = vmatprep.subr.bf16.mxu0 0
        %257 = vmatpush1.bf16.msra.mxu0 0
        %258 = vmatprep.mubr.bf16.mxu0 0
        %259 = vmatmul.mubr.bf16.gmra.mrb[0].mxu0 %v224
        %v260 = vpop.f32.mrb[0].mxu0
        %v261 = vadd.f32 %v191, %v260
        %v262 = vpop.f32.mrb[0].mxu0
        %v263 = vpop.f32.mrb[0].mxu0
        %v264 = vadd.f32 %v191, %v263
        %v265 = vpop.f32.mrb[0].mxu0
        %266 = vdwg.mxu0
        %vm267 = vcmask 261120
        %268 = vst.msk [vmem:[%s164] sm:$0xff] %vm267, %v261
        %269 = vst.msk [vmem:[%s164 + $0x8] sm:$0xff] %vm267, %v264
        %s270 = sand.u32 %s93, 1
        %s271 = scalar_lea.sflag [#allocation3], %s270
        %s272 = sand.u32 %s93, 1
        %s273 = smul.addr %s272, 16
        %s274 = scalar_lea.vmem [#allocation2], %s273
        // Predicated region
        $region33: #{patch_embed_pallas.2} parent=31 // pred_check
          %p275 = pneg %p103
        $region34: #{patch_embed_pallas.2} parent=31 // pred_check_branch
          %277 = sbr.rel (%p275) target = $region36
        $region35: #{patch_embed_pallas.2} parent=31 // pred_region
          %s278 = smul.u32 2, %s17
          %s280 = ssub.s32 256, 256
          %281 = vsyncadd %s271, %s280
          %s282 = smul.addr %s278, 128
          %s283 = scalar_lea.hbm %s3, %s282
          %s284 = sshll.u32 %s274, 4
          %s285 = int_to_ptr.vmem [resolvable:$true] %s284
          %290 = dma.vmem_to_hbm [thread:$0]  %s285, 256, %s283, %s271, 128, 128, 8
        $region36: #{patch_embed_pallas.2} parent=31 // pred_fallthru
          _
      $region32: #{patch_embed_pallas.2} parent=5 // pred_fallthru
        _
      %p291 = scmp.le.s32.totalorder 2, %s12
      // Predicated region
      $region37: #{patch_embed_pallas.2} parent=5 // pred_check
        %p292 = pneg %p291
      $region38: #{patch_embed_pallas.2} parent=5 // pred_check_branch
        %294 = sbr.rel (%p292) target = $region40
      $region39: #{patch_embed_pallas.2} parent=5 // pred_region
        %s295 = ssub.s32 %s12, 2
        // Predicated region
        $region41: #{patch_embed_pallas.2} parent=39 // pred_check
          %p296 = pneg %p109
        $region42: #{patch_embed_pallas.2} parent=39 // pred_check_branch
          %298 = sbr.rel (%p296) target = $region44
        $region43: #{patch_embed_pallas.2} parent=39 // pred_region
          %s299 = sand.u32 %s94, 1
          %s300 = scalar_lea.sflag [#allocation3], %s299
          %s301 = sand.u32 %s94, 1
          %s302 = smul.addr %s301, 16
          %s303 = scalar_lea.vmem [#allocation2], %s302
          %304 = dma.done %s300, 256
        $region44: #{patch_embed_pallas.2} parent=39 // pred_fallthru
          _
      $region40: #{patch_embed_pallas.2} parent=5 // pred_fallthru
        _
    $region6: #{patch_embed_pallas.2} parent=1 // loop_footer
      %s16 = sadd.s32 1, %s12
    $region7: #{patch_embed_pallas.2} parent=1 // loop_footer_branch
      %11 = sbr.rel target = $region3
    $region8: #{patch_embed_pallas.2} parent=1 // loop_exit
      _
    %305 = vsyncpa [#allocation3], 1
    %s306 = scalar_lea.sflag [#allocation3], 1
    %307 = vsyncpa %s306, 1

</llo_original>
